<compile_context>
chip_gen: v5e
topology: v5e:2x2
jax: 0.10.0
libtpu: 0.0.40
codegen_flags: <defaults>
</compile_context>

<pallas_src>
import functools

import jax
import jax.numpy as jnp
from jax.experimental import pallas as pl
from jax.experimental.pallas import tpu as pltpu


def _gem_kernel(p_ref, x_ref, o_ref, *, eps, inv_hw):
    # p_ref: (1,) f32 in SMEM (scalar-prefetched learnable exponent)
    # x_ref: (TR, HW) input-dtype tile in VMEM
    # o_ref: (TR, 1)  output tile in VMEM
    p = p_ref[0]
    inv_p = 1.0 / p  # scalar-unit divide, once per tile

    x = x_ref[...].astype(jnp.float32)          # in-kernel upcast (bf16-friendly)
    x = jnp.maximum(x, eps)                     # clamp(min=eps)
    # x^p via exp(p * log(x)); x >= eps > 0 so log is safe. log/exp hit the
    # EUP slot, which is separate from the VPU/load slots, so this stays
    # memory-bound for f32 and bf16 inputs.
    xp = jnp.exp(p * jnp.log(x))
    m = jnp.sum(xp, axis=-1, keepdims=True) * inv_hw   # mean over full (H, W)
    o_ref[...] = jnp.exp(jnp.log(m) * inv_p).astype(o_ref.dtype)  # ^ (1/p)


def _round_up(a, b):
    return (a + b - 1) // b * b


def _vmem_limit_bytes():
    """Scoped-VMEM limit to request, derived from this generation's capacity."""
    cap = 128 * 1024 * 1024  # v5e/v6e physical VMEM fallback
    try:
        cap = int(pltpu.get_tpu_info().vmem_capacity_bytes)
    except Exception:
        pass
    # At most half of physical VMEM (64 MiB on v5e/v6e, 32 MiB on v7x).
    return min(cap // 2, 64 * 1024 * 1024)


def _pick_row_tile(bc, hw, itemsize, budget_bytes):
    """Row-tile size: fit double-buffered input + f32 temps + padded output.

    The (TR, 1) output block is lane-padded to 128 in VMEM and the element-wise
    chain materializes f32 intermediates, so account for all of it instead of
    only the raw input bytes.
    """
    hw_pad = _round_up(max(hw, 1), 128)          # lane padding of the input tile
    per_row = (
        2 * hw_pad * itemsize                    # double-buffered input block
        + 2 * hw_pad * 4                         # f32 element-wise intermediates
        + 2 * 128 * 4                            # lane-padded (TR,1) out, 2 bufs
    )
    tr = budget_bytes // per_row
    tr = max(8, (tr // 8) * 8)                   # sublane multiple
    if tr >= bc:
        return bc                                # single full-dim block is allowed
    return int(tr)


def gem_pallas(x, p, eps=1e-6):
    """x: (B, C, H, W), p: (1,) float -> (B, C, 1, 1) in x.dtype."""
    B, C, H, W = x.shape
    BC, HW = B * C, H * W
    x2d = x.reshape(BC, HW)                 # no wrapper-side dtype cast
    p = p.astype(jnp.float32)

    itemsize = jnp.dtype(x.dtype).itemsize
    vmem_limit = _vmem_limit_bytes()
    # Keep ~25% headroom below the scoped limit for compiler scratch/regalloc.
    tiling_budget = (vmem_limit * 3) // 4
    TR = _pick_row_tile(BC, HW, itemsize, tiling_budget)
    # TODO(synk): if a single row (H*W) ever exceeds the block budget, add an
    # inner "arbitrary" reduction axis over H*W with a (TR,1) VMEM accumulator
    # and masked partial sums.

    grid = (pl.cdiv(BC, TR),)

    cost = pl.CostEstimate(
        flops=3 * BC * HW,
        transcendentals=2 * BC * HW + 2 * BC,
        bytes_accessed=itemsize * BC * HW + itemsize * BC,
    )

    out2d = pl.pallas_call(
        functools.partial(_gem_kernel, eps=eps, inv_hw=1.0 / float(HW)),
        out_shape=jax.ShapeDtypeStruct((BC, 1), x.dtype),
        grid_spec=pltpu.PrefetchScalarGridSpec(
            num_scalar_prefetch=1,          # p lands in SMEM, passed first
            grid=grid,
            in_specs=[pl.BlockSpec((TR, HW), lambda i, p_ref: (i, 0))],
            out_specs=pl.BlockSpec((TR, 1), lambda i, p_ref: (i, 0)),
        ),
        compiler_params=pltpu.CompilerParams(
            dimension_semantics=("parallel",),   # shards rows across v7x's 2 TCs
            vmem_limit_bytes=vmem_limit,
        ),
        cost_estimate=cost,
    )(p, x2d)

    return out2d.reshape(B, C, 1, 1)


if __name__ == "__main__":
    key = jax.random.PRNGKey(0)
    B, C, H, W = 2, 4, 16, 16
    x = jax.random.normal(key, (B, C, H, W), dtype=jnp.float32)

    # Deterministic parameter init, matching nn.Parameter(torch.ones(1) * 3)
    p = jnp.ones((1,), dtype=jnp.float32) * 3.0
    eps = 1e-6

    out = gem_pallas(x, p, eps)
    jax.block_until_ready(out)

    # Pure-JAX reference check of the same semantics.
    ref = jnp.power(
        jnp.mean(jnp.power(jnp.maximum(x, eps), p[0]), axis=(2, 3), keepdims=True),
        1.0 / p[0],
    )
    assert out.shape == (B, C, 1, 1)
    assert jnp.allclose(out, ref, rtol=1e-5, atol=1e-6), "mismatch vs reference"

    print("KERNEL_OK")
</pallas_src>

<mosaic_0001>
module attributes {stable_mosaic.version = 11 : i64} {
  func.func @_gem_kernel(%arg0: i32, %arg1: memref<1xf32, #tpu.memory_space<smem>>, %arg2: memref<8x256xf32, #tpu.memory_space<vmem>>, %arg3: memref<8x1xf32, #tpu.memory_space<vmem>>) attributes {dimension_semantics = [#tpu.dimension_semantics<parallel>], iteration_bounds = array<i64: 1>, scalar_prefetch = 1 : i64, scratch_operands = 0 : i64, tpu.core_type = #tpu.core_type<tc>, window_params = [{transform_indices = @transform_0, window_bounds = array<i64: 8, 256>}, {transform_indices = @transform_1, window_bounds = array<i64: 8, 1>}]} {
    %c0 = arith.constant 0 : index
    %0 = memref.load %arg1[%c0] : memref<1xf32, #tpu.memory_space<smem>>
    %cst = arith.constant 1.000000e+00 : f32
    %1 = arith.divf %cst, %0 : f32
    %c0_0 = arith.constant 0 : index
    %c0_1 = arith.constant 0 : index
    %2 = vector.load %arg2[%c0_0, %c0_1] : memref<8x256xf32, #tpu.memory_space<vmem>>, vector<8x256xf32>
    %cst_2 = arith.constant 9.99999997E-7 : f32
    %3 = vector.broadcast %cst_2 : f32 to vector<8x256xf32>
    %4 = arith.maximumf %2, %3 : vector<8x256xf32>
    %5 = math.log %4 : vector<8x256xf32>
    %6 = vector.broadcast %0 : f32 to vector<8x256xf32>
    %7 = arith.mulf %6, %5 : vector<8x256xf32>
    %8 = math.exp %7 : vector<8x256xf32>
    %cst_3 = arith.constant dense<0.000000e+00> : vector<8xf32>
    %9 = vector.multi_reduction <add>, %8, %cst_3 [1] : vector<8x256xf32> to vector<8xf32>
    %10 = vector.shape_cast %9 : vector<8xf32> to vector<8x1xf32>
    %cst_4 = arith.constant 3.906250e-03 : f32
    %11 = vector.broadcast %cst_4 : f32 to vector<8x1xf32>
    %12 = arith.mulf %10, %11 : vector<8x1xf32>
    %13 = math.log %12 : vector<8x1xf32>
    %14 = vector.broadcast %1 : f32 to vector<8x1xf32>
    %15 = arith.mulf %13, %14 : vector<8x1xf32>
    %16 = math.exp %15 : vector<8x1xf32>
    %c0_5 = arith.constant 0 : index
    %c0_6 = arith.constant 0 : index
    %17 = vector.load %arg3[%c0_5, %c0_6] : memref<8x1xf32, #tpu.memory_space<vmem>>, vector<8x1xf32>
    tpu.vector_store %arg3[%c0_5, %c0_6], %16 {strides = array<i32>} : memref<8x1xf32, #tpu.memory_space<vmem>>, vector<8x1xf32>,
    return
  }
  func.func @transform_0(%arg0: i32, %arg1: memref<1xf32, #tpu.memory_space<smem>>) -> (i32, i32) {
    %c0_i32 = arith.constant 0 : i32
    %c0_i32_0 = arith.constant 0 : i32
    return %arg0, %c0_i32 : i32, i32
  }
  func.func @transform_1(%arg0: i32, %arg1: memref<1xf32, #tpu.memory_space<smem>>) -> (i32, i32) {
    %c0_i32 = arith.constant 0 : i32
    %c0_i32_0 = arith.constant 0 : i32
    return %arg0, %c0_i32 : i32, i32
  }
}

</mosaic_0001>

<llo_original>
// kernel: tpu_custom_call.1
$region0: #{tpu_custom_call.1}
  #allocation0 [shape = 'u32[]', space=smem, size = 0x4, offset = 0x4, fixed_abs, tag = 'smem constant byte address 0x4 - core index']
  #allocation1 [shape = 'u32[72,128]{1,0:T(1,128)}', space=vmem, size = 0x9000, scoped, tag = 'internal scratch']
  #allocation2 [shape = 's32[1]{0}', space=sflag, size = 0x4, scoped, tag = 'scoped memory for tpu_custom_call.1']
  #allocation3 [shape = 'f32[1]{0:T(128)S(6)}', space=smem, size = 0x200, scoped, tag = 'prefetched SMEM operand 0']
  %s0 = inlined_call_operand.<no memory space> [shape: f32[1], index: 0, kind: input, shape index: {}]
  %s1 = inlined_call_operand.hbm [shape: f32[8,256], index: 1, kind: input, shape index: {}]
  %s2 = inlined_call_operand.vmem [shape: f32[8,1], index: 2, kind: output, shape index: {}]
  %s3 = sld [smem:[#allocation0]]
  $region18: #{tpu_custom_call.1} parent=0
    _
  %s5 = ssub.s32 1, %s3
  %s6 = scalar_select 0, %s5, %s3
  %7 = sst [smem:[#allocation3]] %s0
  $region1: #{tpu_custom_call.1} parent=0
    #allocation4 [shape = 'u8[8192]{0}', space=vmem, size = 0x2000, scoped, tag = 'input window, operand 1, single buffered']
    #allocation5 [shape = 's32[1]{0}', space=sflag, size = 0x4, scoped, tag = 'scoped memory for tpu_custom_call.1']
    %8 = vsyncpa [#allocation5], 0
    // Predicated region
    $region2: #{tpu_custom_call.1} parent=1 // pred_check
      _
    $region3: #{tpu_custom_call.1} parent=1 // pred_check_branch
      %10 = sbr.rel (0) target = $region5
    $region4: #{tpu_custom_call.1} parent=1 // pred_region
      %12 = vsyncadd [#allocation5], 0
      %s14 = sshll.u32 %s1, 4
      %s15 = int_to_ptr.hbm [resolvable:$true] %s14
      %s16 = sshll.u32 [#allocation4], 4
      %s17 = int_to_ptr.vmem [resolvable:$true] %s16
      %19 = dma.hbm_to_vmem [thread:$0]  %s15, 256, %s17, [#allocation5]
    $region5: #{tpu_custom_call.1} parent=1 // pred_fallthru
      _
    // Predicated region
    $region6: #{tpu_custom_call.1} parent=1 // pred_check
      _
    $region7: #{tpu_custom_call.1} parent=1 // pred_check_branch
      %21 = sbr.rel (0) target = $region9
    $region8: #{tpu_custom_call.1} parent=1 // pred_region
      %23 = dma.done [#allocation5], 256
    $region9: #{tpu_custom_call.1} parent=1 // pred_fallthru
      _
    %s24 = sld [smem:[#allocation3]]
    %v25 = vstv %s24
    %v26 = vrcp.pop %v25
    %v27 = vmul.f32 %v25, %v26
    %v28 = vsub.f32 1.0, %v27
    %v29 = vmul.f32 %v26, %v28
    %v30 = vadd.f32 %v26, %v29
    %vm31 = vweird.f32 %v25
    %vm32 = vweird.f32 %v26
    %vm33 = vmor %vm31, %vm32
    %v34 = vsel %vm33, %v26, %v30
    %v35 = vand.u32 2147483647, %v25
    %vm36 = vcmp.eq.f32.partialorder %v35, 8.507059e+37
    %v37 = vand.u32 %v25, 2147483648
    %v38 = vor.u32 1.1754944e-38, %v37
    %v39 = vsel %vm36, %v38, %v34
    %s40 = vtos %v39
    %v41 = vld [vmem:[#allocation4] sm:$0xff]
    %v42 = vld [vmem:[#allocation4 + $0x8] sm:$0xff]
    %v43 = vmax.f32 %v41, 1e-06
    %v44 = vmax.f32 %v42, 1e-06
    %v45 = vlog2.pop %v43
    %v46 = vmul.f32 %v45, 0.6931472
    %v47 = vlog2.pop %v44
    %v48 = vmul.f32 %v47, 0.6931472
    %v49 = vstv %s24
    %v50 = vmul.f32 %v49, %v46
    %v51 = vmul.f32 %v49, %v48
    %v52 = vmul.f32 %v50, 1.442695
    %v53 = vpow.pop %v52
    %v54 = vmul.f32 %v51, 1.442695
    %v55 = vpow.pop %v54
    %v56 = vadd.f32 %v53, %v55
    %57 = vadd.xlane.f32.xlu0 %v56
    %v58 = vpop.xlane.xlu0 %57
    %v59 = vmul.f32 %v58, 0.00390625
    %v60 = vlog2.pop %v59
    %v61 = vmul.f32 %v60, 0.6931472
    %v62 = vstv %s40
    %v63 = vmul.f32 %v61, %v62
    %v64 = vmul.f32 %v63, 1.442695
    %v65 = vpow.pop %v64
    %vm66 = vcmask 7168
    %67 = vst.msk [vmem:[%s2] sm:$0xff] %vm66, %v65
    // Predicated region
    $region10: #{tpu_custom_call.1} parent=1 // pred_check
      _
    $region11: #{tpu_custom_call.1} parent=1 // pred_check_branch
      %69 = sbr.rel (0) target = $region13
    $region12: #{tpu_custom_call.1} parent=1 // pred_region
      _
    $region13: #{tpu_custom_call.1} parent=1 // pred_fallthru
      _
    // Predicated region
    $region14: #{tpu_custom_call.1} parent=1 // pred_check
      _
    $region15: #{tpu_custom_call.1} parent=1 // pred_check_branch
      %71 = sbr.rel (0) target = $region17
    $region16: #{tpu_custom_call.1} parent=1 // pred_region
      _
    $region17: #{tpu_custom_call.1} parent=1 // pred_fallthru
      _
    %72 = vsyncpa [#allocation5], 1

</llo_original>
